<compile_context>
chip_gen: v7x
topology: tpu7x:2x2x1
jax: 0.10.0
libtpu: 0.0.40
codegen_flags: <defaults>
</compile_context>

<pallas_src>
import numpy as np
import jax
import jax.numpy as jnp
from jax.experimental import pallas as pl
from jax.experimental.pallas import tpu as pltpu


# ----------------------------------------------------------------------------
# Shared aux-buffer layout (packed small parameters, 128 lanes wide)
# ----------------------------------------------------------------------------
def aux_layout(depth, n_classes):
    N = 2 ** depth - 1                      # internal nodes
    L = 2 ** depth                          # leaves
    C = n_classes
    NP = ((N + 1 + 7) // 8) * 8             # node axis padded to >= N+1, multiple of 8
    off_bias_col = 0                        # rows [0, NP): col0 bias, col1 beta   (batch-1 kernel)
    off_rew_col = NP                        # rows [NP, NP+C): col0 class reward   (both kernels)
    off_dist_t = NP + C                     # rows [NP+C, NP+2C): cols [0,L) dist^T (both kernels)
    off_bias_row = NP + 2 * C               # one row, lanes [0,N): bias           (batched kernel)
    off_beta_row = off_bias_row + 1         # one row, lanes [0,N): beta           (batched kernel)
    off_sgn = off_beta_row + 1              # depth blocks of (NP, L): +1 left / -1 right / 0 off-path
    off_cst = off_sgn + depth * NP          # depth rows of (1, L): 1.0 where leaf turns right
    R = off_cst + depth
    return dict(N=N, L=L, C=C, NP=NP, R=R,
                off_bias_col=off_bias_col, off_rew_col=off_rew_col,
                off_dist_t=off_dist_t, off_bias_row=off_bias_row,
                off_beta_row=off_beta_row, off_sgn=off_sgn, off_cst=off_cst)


def build_aux(depth, bias, beta, dist, class_reward):
    """Pack bias/beta/reward/dist + per-level path matrices into one (R,128) buffer."""
    lay = aux_layout(depth, len(class_reward))
    N, NP, L, C, R = lay["N"], lay["NP"], lay["L"], lay["C"], lay["R"]
    aux = np.zeros((R, 128), np.float32)    # last dim = full 128 lanes (review item)

    b = np.asarray(bias, np.float32).reshape(-1)
    bt = np.asarray(beta, np.float32).reshape(-1)
    rw = np.asarray(class_reward, np.float32).reshape(-1)
    d = np.asarray(dist, np.float32)        # (L, C)

    aux[lay["off_bias_col"]:lay["off_bias_col"] + N, 0] = b
    aux[lay["off_bias_col"]:lay["off_bias_col"] + N, 1] = bt
    aux[lay["off_rew_col"]:lay["off_rew_col"] + C, 0] = rw
    aux[lay["off_dist_t"]:lay["off_dist_t"] + C, 0:L] = d.T
    aux[lay["off_bias_row"], 0:N] = b
    aux[lay["off_beta_row"], 0:N] = bt

    off_sgn, off_cst = lay["off_sgn"], lay["off_cst"]
    for leaf in range(L):
        node = 0
        for k in range(depth):
            bit = (leaf >> (depth - 1 - k)) & 1
            if bit == 0:                                   # left turn: factor = p[node]
                aux[off_sgn + k * NP + node, leaf] = 1.0
            else:                                          # right turn: factor = 1 - p[node]
                aux[off_sgn + k * NP + node, leaf] = -1.0
                aux[off_cst + k, leaf] = 1.0
            node = 2 * node + 1 + bit
    return jnp.asarray(aux)


# ----------------------------------------------------------------------------
# Kernel A: single sample (module-exact batch=1), VPU matvec, packed wx buffer
# ----------------------------------------------------------------------------
def make_sdt_single_kernel(depth, n_classes):
    lay = aux_layout(depth, n_classes)
    N, NP, L, C = lay["N"], lay["NP"], lay["L"], lay["C"]
    ob, orw, odt = lay["off_bias_col"], lay["off_rew_col"], lay["off_dist_t"]
    osg, ocs = lay["off_sgn"], lay["off_cst"]

    def kernel(wx_ref, aux_ref, out_ref):
        # wx_ref : (NP, D)  rows [0,N)=W, row N = flattened x, remaining rows 0
        # aux_ref: (R, 128) packed small parameters
        # out_ref: (1, 1)   maxLeaf_QR
        wx = wx_ref[...]
        x = wx_ref[N:N + 1, :]                                # (1, D)
        aux = aux_ref[...]

        # Per-node pre-activation on the VPU (exact f32): full 8-sublane tile.
        # Rows >= N are dummies (beta=0 there -> gate 0.5) and never contribute
        # because their sgn rows are zero.
        logit = jnp.sum(wx * x, axis=1, keepdims=True)        # (NP, 1)
        bias = aux[ob:ob + NP, 0:1]
        beta = aux[ob:ob + NP, 1:2]
        p = jax.nn.sigmoid(beta * (logit + bias))             # (NP, 1)

        # Leaf path probabilities: product over the `depth` levels; each level
        # is one masked sublane-sum (exactly one node contributes per leaf).
        leaf_probs = jnp.ones((1, L), jnp.float32)
        for k in range(depth):
            sgn = aux[osg + k * NP: osg + (k + 1) * NP, 0:L]  # (NP, L)
            cst = aux[ocs + k: ocs + k + 1, 0:L]              # (1, L)
            lvl = cst + jnp.sum(sgn * p, axis=0, keepdims=True)
            leaf_probs = leaf_probs * lvl

        # FIRST-argmax leaf (Python max() tie-break).
        col = jax.lax.broadcasted_iota(jnp.int32, (1, L), 1)
        max_p = jnp.max(leaf_probs)
        best = jnp.min(jnp.where(leaf_probs >= max_p, col, L))
        onehot = (col == best).astype(jnp.float32)            # (1, L)

        # Softmax of the chosen leaf distribution, then reward inner product.
        dist_t = aux[odt:odt + C, 0:L]                        # (C, L)
        chosen = jnp.sum(dist_t * onehot, axis=1, keepdims=True)  # (C, 1)
        m = jnp.max(chosen, axis=0, keepdims=True)
        e = jnp.exp(chosen - m)
        q = e / jnp.sum(e, axis=0, keepdims=True)             # (C, 1)
        rew = aux[orw:orw + C, 0:1]                           # (C, 1)
        out_ref[...] = jnp.sum(q * rew, axis=0, keepdims=True)

    return kernel


# ----------------------------------------------------------------------------
# Kernel B: batched throughput path (grid over batch tiles, MXU logits)
# ----------------------------------------------------------------------------
def make_sdt_batched_kernel(depth, n_classes):
    lay = aux_layout(depth, n_classes)
    N, NP, L, C = lay["N"], lay["NP"], lay["L"], lay["C"]
    obr, obe = lay["off_bias_row"], lay["off_beta_row"]
    orw, odt = lay["off_rew_col"], lay["off_dist_t"]
    osg, ocs = lay["off_sgn"], lay["off_cst"]

    def kernel(x_ref, w_ref, aux_ref, out_ref):
        # x_ref  : (TB, D) tile of flattened inputs
        # w_ref  : (N, D)  stacked per-node Linear weights (natural layout)
        # aux_ref: (R, 128) packed small parameters
        # out_ref: (TB, 1) maxLeaf_QR per sample
        tb = x_ref.shape[0]
        x = x_ref[...]
        w = w_ref[...]
        aux = aux_ref[...]

        # Per-node pre-activations for the whole tile on the MXU: one matmul
        # (contraction over D stays on lanes) instead of TB serial VPU reduces.
        logits = jax.lax.dot_general(
            x, w, (((1,), (1,)), ((), ())),
            preferred_element_type=jnp.float32)               # (TB, N)
        bias = aux[obr:obr + 1, 0:N]                          # (1, N)
        beta = aux[obe:obe + 1, 0:N]                          # (1, N)
        p = jax.nn.sigmoid(beta * (logits + bias))            # (TB, N)

        # Root->leaf path probabilities, unrolled over the N internal nodes:
        # each node contributes one (1,L) constant row times its (TB,1) gate
        # column.  Exact f32 VPU work; no tiny matmuls on the gate values.
        leaf_probs = None
        for k in range(depth):
            acc = aux[ocs + k: ocs + k + 1, 0:L]              # (1, L)
            for n in range(2 ** k - 1, 2 ** (k + 1) - 1):
                srow = aux[osg + k * NP + n: osg + k * NP + n + 1, 0:L]
                acc = acc + srow * p[:, n:n + 1]              # (TB, L)
            leaf_probs = acc if leaf_probs is None else leaf_probs * acc

        # FIRST-argmax leaf per row.
        col = jax.lax.broadcasted_iota(jnp.int32, (tb, L), 1)
        max_p = jnp.max(leaf_probs, axis=1, keepdims=True)
        best = jnp.min(jnp.where(leaf_probs >= max_p, col, L),
                       axis=1, keepdims=True)
        onehot = (col == best).astype(jnp.float32)            # (TB, L)

        # Per-leaf value softmax(dist_l) . class_reward (input independent,
        # computed once per tile), then selected per row with the one-hot mask.
        dist_t = aux[odt:odt + C, 0:L]                        # (C, L)
        m = jnp.max(dist_t, axis=0, keepdims=True)
        e = jnp.exp(dist_t - m)
        q = e / jnp.sum(e, axis=0, keepdims=True)             # (C, L)
        rew = aux[orw:orw + C, 0:1]                           # (C, 1)
        leaf_value = jnp.sum(q * rew, axis=0, keepdims=True)  # (1, L)

        out_ref[...] = jnp.sum(onehot * leaf_value, axis=1, keepdims=True)

    return kernel


# ----------------------------------------------------------------------------
# Wrappers
# ----------------------------------------------------------------------------
def soft_decision_tree_forward(x, W, aux, *, depth, n_classes):
    """Module-exact forward for ONE input (torch.reshape(input, (1,-1)))."""
    lay = aux_layout(depth, n_classes)
    N, NP = lay["N"], lay["NP"]
    x2d = jnp.reshape(x, (1, -1)).astype(jnp.float32)
    D = x2d.shape[1]
    # Pack x as an extra row of the W buffer: one (NP, D) input instead of two;
    # the 8-sublane tile of the multiply/reduce is fully used.
    wx = jnp.zeros((NP, D), jnp.float32)
    wx = wx.at[0:N, :].set(W.astype(jnp.float32))
    wx = wx.at[N, :].set(x2d[0])

    kernel = make_sdt_single_kernel(depth, n_classes)
    vmem = pl.BlockSpec(memory_space=pltpu.MemorySpace.VMEM)
    out = pl.pallas_call(
        kernel,
        out_shape=jax.ShapeDtypeStruct((1, 1), jnp.float32),
        in_specs=[vmem, vmem],
        out_specs=vmem,
    )(wx, aux)
    # TODO(synk): PyTorch returns float64 (class_reward is .double()); TPU kernel stays float32.
    return out.reshape(-1)                                    # (1,)


def soft_decision_tree_forward_batched(xb, W, aux, *, depth, n_classes, tb=None):
    """Batched forward: row i equals soft_decision_tree_forward(xb[i])."""
    lay = aux_layout(depth, n_classes)
    N, R = lay["N"], lay["R"]
    B = xb.shape[0]
    xf = jnp.reshape(xb, (B, -1)).astype(jnp.float32)
    D = xf.shape[1]

    if tb is None:
        # >=512 rows for v5e/v6e roofline; x-tile 512x2048 f32 = 4 MB x 2 bufs
        # keeps the kernel inside v7x's 64 MiB VMEM (32 MiB scoped default).
        tb = B if B <= 512 else 512
    if tb != B:
        tb = max(8, (tb // 8) * 8)          # sublane-aligned batch tile
    bp = -(-B // tb) * tb
    if bp != B:
        xf = jnp.concatenate([xf, jnp.zeros((bp - B, D), jnp.float32)], axis=0)

    kernel = make_sdt_batched_kernel(depth, n_classes)
    out = pl.pallas_call(
        kernel,
        out_shape=jax.ShapeDtypeStruct((bp, 1), jnp.float32),
        grid=(bp // tb,),
        in_specs=[pl.BlockSpec((tb, D), lambda b: (b, 0)),
                  pl.BlockSpec((N, D), lambda b: (0, 0)),
                  pl.BlockSpec((R, 128), lambda b: (0, 0))],
        out_specs=pl.BlockSpec((tb, 1), lambda b: (b, 0)),
        compiler_params=pltpu.CompilerParams(
            dimension_semantics=("parallel",)),               # megacore on v7x
    )(xf, W.astype(jnp.float32), aux)
    return out[:B, 0]                                         # (B,)


# ----------------------------------------------------------------------------
# Pure-JAX reference (independent of the kernels' aux packing)
# ----------------------------------------------------------------------------
def soft_decision_tree_reference(xb, W, bias, beta, dist, class_reward, depth):
    B = xb.shape[0]
    xf = jnp.reshape(xb, (B, -1)).astype(jnp.float32)
    logits = jnp.dot(xf, W.T, precision=jax.lax.Precision.HIGHEST) + bias.reshape(1, -1)
    p = jax.nn.sigmoid(beta.reshape(1, -1) * logits)          # (B, N)
    L = 2 ** depth
    cols = []
    for leaf in range(L):
        node = 0
        prob = jnp.ones((B,), jnp.float32)
        for k in range(depth):
            bit = (leaf >> (depth - 1 - k)) & 1
            gate = p[:, node]
            prob = prob * (gate if bit == 0 else (1.0 - gate))
            node = 2 * node + 1 + bit
        cols.append(prob)
    leaf_probs = jnp.stack(cols, axis=1)                      # (B, L)
    best = jnp.argmax(leaf_probs, axis=1)                     # first max, like Python max()
    q = jax.nn.softmax(dist[best], axis=1)                    # (B, C)
    rew = jnp.asarray(class_reward, jnp.float32).reshape(1, -1)
    return jnp.sum(q * rew, axis=1)                           # (B,)


# ----------------------------------------------------------------------------
# Main
# ----------------------------------------------------------------------------
if __name__ == "__main__":
    depth = 3                              # 7 internal nodes, 8 leaves
    class_reward_vector = [1.0, -1.0]      # nb_classes = 2 (reshape(-1, 2) requires multiple of 2)
    nb_classes = len(class_reward_vector)

    x_shape = (2, 4, 16, 16)               # forward flattens -> input_size = 2048
    input_size = int(np.prod(x_shape))
    n_nodes = 2 ** depth - 1
    n_leaves = 2 ** depth

    key = jax.random.PRNGKey(0)
    k_w, k_b, k_bs, k_beta, k_dist, k_x, k_xb = jax.random.split(key, 7)

    # Test parameters: weights small and |bias| >= 0.5 so every routing gate is
    # decisively away from 0.5 -> the first-argmax leaf choice is insensitive
    # to the backend's f32 matmul contraction precision (MXU path of the
    # batched kernel), keeping the 1e-4 comparison below meaningful.
    limit = 0.1 / np.sqrt(input_size)
    W = jax.random.uniform(k_w, (n_nodes, input_size), jnp.float32, -limit, limit)
    bias = (jnp.where(jax.random.bernoulli(k_bs, 0.5, (n_nodes,)), 1.0, -1.0)
            * jax.random.uniform(k_b, (n_nodes,), jnp.float32, 0.5, 1.5))
    beta = jax.random.uniform(k_beta, (n_nodes,), jnp.float32, 0.0, 1.0)          # torch.rand(1) per node
    dist = jax.random.uniform(k_dist, (n_leaves, nb_classes), jnp.float32, 0.0, 1.0)  # torch.rand(C) per leaf
    aux = build_aux(depth, bias, beta, dist, class_reward_vector)

    # ---- single sample, module-exact semantics (batch = 1) ----
    x = jax.random.normal(k_x, x_shape, jnp.float32)
    out1 = jax.block_until_ready(
        soft_decision_tree_forward(x, W, aux, depth=depth, n_classes=nb_classes))
    ref1 = jax.block_until_ready(
        soft_decision_tree_reference(x[None], W, bias, beta, dist,
                                     class_reward_vector, depth))
    assert out1.shape == (1,), out1.shape
    np.testing.assert_allclose(np.asarray(out1), np.asarray(ref1), rtol=1e-4, atol=1e-4)

    # ---- batched throughput path (== calling forward once per sample) ----
    B = 16
    xb = jax.random.normal(k_xb, (B,) + x_shape, jnp.float32)
    outb = jax.block_until_ready(
        soft_decision_tree_forward_batched(xb, W, aux, depth=depth,
                                           n_classes=nb_classes, tb=8))
    refb = jax.block_until_ready(
        soft_decision_tree_reference(xb, W, bias, beta, dist,
                                     class_reward_vector, depth))
    assert outb.shape == (B,), outb.shape
    np.testing.assert_allclose(np.asarray(outb), np.asarray(refb), rtol=1e-4, atol=1e-4)

    print("KERNEL_OK")
</pallas_src>

<mosaic_0001>
module attributes {stable_mosaic.version = 11 : i64} {
  func.func @kernel(%arg0: memref<8x2048xf32, #tpu.memory_space<vmem>>, %arg1: memref<41x128xf32, #tpu.memory_space<vmem>>, %arg2: memref<1x1xf32, #tpu.memory_space<vmem>>) attributes {dimension_semantics = [], scalar_prefetch = 0 : i64, scratch_operands = 0 : i64, tpu.core_type = #tpu.core_type<tc>} {
    %c0 = arith.constant 0 : index
    %c0_0 = arith.constant 0 : index
    %0 = vector.load %arg0[%c0, %c0_0] : memref<8x2048xf32, #tpu.memory_space<vmem>>, vector<8x2048xf32>
    %c7 = arith.constant 7 : index
    %c0_1 = arith.constant 0 : index
    %1 = vector.load %arg0[%c7, %c0_1] : memref<8x2048xf32, #tpu.memory_space<vmem>>, vector<1x2048xf32>
    %c0_2 = arith.constant 0 : index
    %c0_3 = arith.constant 0 : index
    %2 = vector.load %arg1[%c0_2, %c0_3] : memref<41x128xf32, #tpu.memory_space<vmem>>, vector<41x128xf32>
    %3 = vector.broadcast %1 : vector<1x2048xf32> to vector<8x2048xf32>
    %4 = arith.mulf %0, %3 : vector<8x2048xf32>
    %cst = arith.constant dense<0.000000e+00> : vector<8xf32>
    %5 = vector.multi_reduction <add>, %4, %cst [1] : vector<8x2048xf32> to vector<8xf32>
    %6 = vector.shape_cast %5 : vector<8xf32> to vector<8x1xf32>
    %7 = vector.extract_strided_slice %2 {offsets = [0, 0], sizes = [8, 1], strides = [1, 1]} : vector<41x128xf32> to vector<8x1xf32>
    %8 = vector.extract_strided_slice %2 {offsets = [0, 1], sizes = [8, 1], strides = [1, 1]} : vector<41x128xf32> to vector<8x1xf32>
    %9 = arith.addf %6, %7 : vector<8x1xf32>
    %10 = arith.mulf %8, %9 : vector<8x1xf32>
    %11 = arith.negf %10 : vector<8x1xf32>
    %12 = math.exp %11 : vector<8x1xf32>
    %cst_4 = arith.constant 1.000000e+00 : f32
    %13 = vector.broadcast %cst_4 : f32 to vector<8x1xf32>
    %14 = arith.addf %13, %12 : vector<8x1xf32>
    %15 = arith.divf %13, %14 : vector<8x1xf32>
    %cst_5 = arith.constant 1.000000e+00 : f32
    %16 = vector.broadcast %cst_5 : f32 to vector<1x8xf32>
    %17 = vector.extract_strided_slice %2 {offsets = [14, 0], sizes = [8, 8], strides = [1, 1]} : vector<41x128xf32> to vector<8x8xf32>
    %18 = vector.extract_strided_slice %2 {offsets = [38, 0], sizes = [1, 8], strides = [1, 1]} : vector<41x128xf32> to vector<1x8xf32>
    %19 = vector.broadcast %15 : vector<8x1xf32> to vector<8x8xf32>
    %20 = arith.mulf %17, %19 : vector<8x8xf32>
    %cst_6 = arith.constant dense<0.000000e+00> : vector<8xf32>
    %21 = vector.multi_reduction <add>, %20, %cst_6 [0] : vector<8x8xf32> to vector<8xf32>
    %22 = vector.shape_cast %21 : vector<8xf32> to vector<1x8xf32>
    %23 = arith.addf %18, %22 : vector<1x8xf32>
    %24 = arith.mulf %16, %23 : vector<1x8xf32>
    %25 = vector.extract_strided_slice %2 {offsets = [22, 0], sizes = [8, 8], strides = [1, 1]} : vector<41x128xf32> to vector<8x8xf32>
    %26 = vector.extract_strided_slice %2 {offsets = [39, 0], sizes = [1, 8], strides = [1, 1]} : vector<41x128xf32> to vector<1x8xf32>
    %27 = vector.broadcast %15 : vector<8x1xf32> to vector<8x8xf32>
    %28 = arith.mulf %25, %27 : vector<8x8xf32>
    %cst_7 = arith.constant dense<0.000000e+00> : vector<8xf32>
    %29 = vector.multi_reduction <add>, %28, %cst_7 [0] : vector<8x8xf32> to vector<8xf32>
    %30 = vector.shape_cast %29 : vector<8xf32> to vector<1x8xf32>
    %31 = arith.addf %26, %30 : vector<1x8xf32>
    %32 = arith.mulf %24, %31 : vector<1x8xf32>
    %33 = vector.extract_strided_slice %2 {offsets = [30, 0], sizes = [8, 8], strides = [1, 1]} : vector<41x128xf32> to vector<8x8xf32>
    %34 = vector.extract_strided_slice %2 {offsets = [40, 0], sizes = [1, 8], strides = [1, 1]} : vector<41x128xf32> to vector<1x8xf32>
    %35 = vector.broadcast %15 : vector<8x1xf32> to vector<8x8xf32>
    %36 = arith.mulf %33, %35 : vector<8x8xf32>
    %cst_8 = arith.constant dense<0.000000e+00> : vector<8xf32>
    %37 = vector.multi_reduction <add>, %36, %cst_8 [0] : vector<8x8xf32> to vector<8xf32>
    %38 = vector.shape_cast %37 : vector<8xf32> to vector<1x8xf32>
    %39 = arith.addf %34, %38 : vector<1x8xf32>
    %40 = arith.mulf %32, %39 : vector<1x8xf32>
    %41 = tpu.iota {dimensions = array<i32: 1>} : vector<1x8xi32>
    %42 = vector.shape_cast %40 : vector<1x8xf32> to vector<1x1x8xf32>
    %cst_9 = arith.constant dense<0xFF800000> : vector<1xf32>
    %43 = vector.multi_reduction <maximumf>, %42, %cst_9 [1, 2] : vector<1x1x8xf32> to vector<1xf32>
    %44 = vector.shape_cast %43 : vector<1xf32> to vector<1x1x1xf32>
    %45 = vector.extract %44[0, 0, 0] : f32 from vector<1x1x1xf32>
    %46 = vector.broadcast %45 : f32 to vector<1x8xf32>
    %47 = arith.cmpf oge, %40, %46 : vector<1x8xf32>
    %c8_i32 = arith.constant 8 : i32
    %48 = vector.broadcast %c8_i32 : i32 to vector<1x8xi32>
    %49 = arith.select %47, %41, %48 : vector<1x8xi1>, vector<1x8xi32>
    %50 = vector.shape_cast %49 : vector<1x8xi32> to vector<1x1x8xi32>
    %cst_10 = arith.constant dense<2147483647> : vector<1xi32>
    %51 = vector.multi_reduction <minsi>, %50, %cst_10 [1, 2] : vector<1x1x8xi32> to vector<1xi32>
    %52 = vector.shape_cast %51 : vector<1xi32> to vector<1x1x1xi32>
    %53 = vector.extract %52[0, 0, 0] : i32 from vector<1x1x1xi32>
    %54 = vector.broadcast %53 : i32 to vector<1x8xi32>
    %55 = arith.cmpi eq, %41, %54 : vector<1x8xi32>
    %56 = arith.extui %55 : vector<1x8xi1> to vector<1x8xi32>
    %57 = arith.sitofp %56 : vector<1x8xi32> to vector<1x8xf32>
    %58 = vector.extract_strided_slice %2 {offsets = [10, 0], sizes = [2, 8], strides = [1, 1]} : vector<41x128xf32> to vector<2x8xf32>
    %59 = vector.broadcast %57 : vector<1x8xf32> to vector<2x8xf32>
    %60 = arith.mulf %58, %59 : vector<2x8xf32>
    %cst_11 = arith.constant dense<0.000000e+00> : vector<2xf32>
    %61 = vector.multi_reduction <add>, %60, %cst_11 [1] : vector<2x8xf32> to vector<2xf32>
    %62 = vector.shape_cast %61 : vector<2xf32> to vector<2x1xf32>
    %cst_12 = arith.constant dense<0xFF800000> : vector<1xf32>
    %63 = vector.multi_reduction <maximumf>, %62, %cst_12 [0] : vector<2x1xf32> to vector<1xf32>
    %64 = vector.shape_cast %63 : vector<1xf32> to vector<1x1xf32>
    %65 = vector.broadcast %64 : vector<1x1xf32> to vector<2x1xf32>
    %66 = arith.subf %62, %65 : vector<2x1xf32>
    %67 = math.exp %66 : vector<2x1xf32>
    %cst_13 = arith.constant dense<0.000000e+00> : vector<1xf32>
    %68 = vector.multi_reduction <add>, %67, %cst_13 [0] : vector<2x1xf32> to vector<1xf32>
    %69 = vector.shape_cast %68 : vector<1xf32> to vector<1x1xf32>
    %70 = vector.broadcast %69 : vector<1x1xf32> to vector<2x1xf32>
    %71 = arith.divf %67, %70 : vector<2x1xf32>
    %72 = vector.extract_strided_slice %2 {offsets = [8, 0], sizes = [2, 1], strides = [1, 1]} : vector<41x128xf32> to vector<2x1xf32>
    %73 = arith.mulf %71, %72 : vector<2x1xf32>
    %cst_14 = arith.constant dense<0.000000e+00> : vector<1xf32>
    %74 = vector.multi_reduction <add>, %73, %cst_14 [0] : vector<2x1xf32> to vector<1xf32>
    %75 = vector.shape_cast %74 : vector<1xf32> to vector<1x1xf32>
    %c0_15 = arith.constant 0 : index
    %c0_16 = arith.constant 0 : index
    %76 = vector.load %arg2[%c0_15, %c0_16] : memref<1x1xf32, #tpu.memory_space<vmem>>, vector<1x1xf32>
    tpu.vector_store %arg2[%c0_15, %c0_16], %75 {strides = array<i32>} : memref<1x1xf32, #tpu.memory_space<vmem>>, vector<1x1xf32>,
    return
  }
}

</mosaic_0001>

<llo_original>
// kernel: tpu_custom_call.1
$region0: #{tpu_custom_call.1}
  #allocation0 [shape = 'u32[]', space=smem, size = 0x4, offset = 0x4, fixed_abs, tag = 'smem constant byte address 0x4 - core index']
  #allocation1 [shape = 'u32[144,128]{1,0:T(1,128)}', space=vmem, size = 0x12000, scoped, tag = 'internal scratch']
  %s0 = inlined_call_operand.hbm [shape: f32[8,2048], index: 0, kind: input, shape index: {}]
  %s1 = inlined_call_operand.hbm [shape: f32[41,128], index: 1, kind: input, shape index: {}]
  %s2 = inlined_call_operand.hbm [shape: f32[1,1], index: 2, kind: output, shape index: {}]
  %s3 = sld [smem:[#allocation0]]
  $region26: #{tpu_custom_call.1} parent=0
    _
  %s5 = ssub.s32 1, %s3
  %s6 = scalar_select 0, %s5, %s3
  $region1: #{tpu_custom_call.1} parent=0
    #allocation2 [shape = 'u8[65536]{0}', space=vmem, size = 0x10000, scoped, tag = 'input window, operand 0, single buffered']
    #allocation3 [shape = 's32[1]{0}', space=sflag, size = 0x4, scoped, tag = 'scoped memory for tpu_custom_call.1']
    #allocation4 [shape = 's32[1]{0}', space=sflag, size = 0x4, scoped, tag = 'scoped memory for tpu_custom_call.1']
    #allocation5 [shape = 'u8[24576]{0}', space=vmem, size = 0x6000, scoped, tag = 'input window, operand 1, single buffered']
    #allocation6 [shape = 's32[1]{0}', space=sflag, size = 0x4, scoped, tag = 'scoped memory for tpu_custom_call.1']
    #allocation7 [shape = 'u8[512]{0}', space=vmem, size = 0x400, scoped, tag = 'output window, operand 0, single buffered']
    %7 = vsyncpa [#allocation3], 0
    %8 = vsyncpa [#allocation6], 0
    %9 = vsyncpa [#allocation4], 0
    // Predicated region
    $region2: #{tpu_custom_call.1} parent=1 // pred_check
      _
    $region3: #{tpu_custom_call.1} parent=1 // pred_check_branch
      %11 = sbr.rel (0) target = $region5
    $region4: #{tpu_custom_call.1} parent=1 // pred_region
      %s13 = ssub.s32 2048, 2048
      %14 = vsyncadd [#allocation3], %s13
      %s16 = sshll.u32 [#allocation2], 4
      %s17 = int_to_ptr.vmem [resolvable:$true] %s16
      %19 = dma.hbm_to_vmem [thread:$0]  %s0, 2048, %s17, [#allocation3]
    $region5: #{tpu_custom_call.1} parent=1 // pred_fallthru
      _
    // Predicated region
    $region6: #{tpu_custom_call.1} parent=1 // pred_check
      _
    $region7: #{tpu_custom_call.1} parent=1 // pred_check_branch
      %21 = sbr.rel (0) target = $region9
    $region8: #{tpu_custom_call.1} parent=1 // pred_region
      %s23 = ssub.s32 768, 768
      %24 = vsyncadd [#allocation6], %s23
      %s25 = sshll.u32 [#allocation5], 4
      %s26 = int_to_ptr.vmem [resolvable:$true] %s25
      %31 = dma.hbm_to_vmem [thread:$0]  %s1, 768, %s26, [#allocation6], 128, 128, 8
    $region9: #{tpu_custom_call.1} parent=1 // pred_fallthru
      _
    // Predicated region
    $region10: #{tpu_custom_call.1} parent=1 // pred_check
      _
    $region11: #{tpu_custom_call.1} parent=1 // pred_check_branch
      %33 = sbr.rel (0) target = $region13
    $region12: #{tpu_custom_call.1} parent=1 // pred_region
      %34 = dma.done [#allocation3], 2048
    $region13: #{tpu_custom_call.1} parent=1 // pred_fallthru
      _
    // Predicated region
    $region14: #{tpu_custom_call.1} parent=1 // pred_check
      _
    $region15: #{tpu_custom_call.1} parent=1 // pred_check_branch
      %36 = sbr.rel (0) target = $region17
    $region16: #{tpu_custom_call.1} parent=1 // pred_region
      %37 = dma.done [#allocation6], 768
    $region17: #{tpu_custom_call.1} parent=1 // pred_fallthru
      _
    %v38 = vld [vmem:[#allocation2] sm:$0xff]
    %v39 = vld [vmem:[#allocation2 + $0x8] sm:$0xff]
    %v40 = vld [vmem:[#allocation2 + $0x10] sm:$0xff]
    %v41 = vld [vmem:[#allocation2 + $0x18] sm:$0xff]
    %v42 = vld [vmem:[#allocation2 + $0x20] sm:$0xff]
    %v43 = vld [vmem:[#allocation2 + $0x28] sm:$0xff]
    %v44 = vld [vmem:[#allocation2 + $0x30] sm:$0xff]
    %v45 = vld [vmem:[#allocation2 + $0x38] sm:$0xff]
    %v46 = vld [vmem:[#allocation2 + $0x40] sm:$0xff]
    %v47 = vld [vmem:[#allocation2 + $0x48] sm:$0xff]
    %v48 = vld [vmem:[#allocation2 + $0x50] sm:$0xff]
    %v49 = vld [vmem:[#allocation2 + $0x58] sm:$0xff]
    %v50 = vld [vmem:[#allocation2 + $0x60] sm:$0xff]
    %v51 = vld [vmem:[#allocation2 + $0x68] sm:$0xff]
    %v52 = vld [vmem:[#allocation2 + $0x70] sm:$0xff]
    %v53 = vld [vmem:[#allocation2 + $0x78] sm:$0xff]
    %s54 = scalar_lea.vmem [#allocation2], 7
    %v55 = vld [vmem:[%s54] ss:$8 sm:$0xf]
    %v56 = vld [vmem:[%s54] ss:$8 sm:$0xf0]
    %v57 = vor.u32 %v55, %v56
    %s58 = scalar_lea.vmem [#allocation2], 71
    %v59 = vld [vmem:[%s58] ss:$8 sm:$0xf]
    %v60 = vld [vmem:[%s58] ss:$8 sm:$0xf0]
    %v61 = vor.u32 %v59, %v60
    %v62 = vld [vmem:[#allocation5] sm:$0xff]
    %v63 = vld [vmem:[#allocation5 + $0x8] sm:$0xff]
    %v64 = vld [vmem:[#allocation5 + $0x10] sm:$0xff]
    %v65 = vld [vmem:[#allocation5 + $0x18] sm:$0xff]
    %v66 = vld [vmem:[#allocation5 + $0x20] sm:$0xff]
    %v67 = vld [vmem:[#allocation5 + $0x28] sm:$0x1]
    %v70 = vlaneseq
    %v71 = vshrl.u32 %v70, 7
    %v72 = vsub.s32 0, %v71
    %v73 = vrot.slane %v57, %v72
    %v74 = vlaneseq
    %v75 = vshrl.u32 %v74, 7
    %v76 = vsub.s32 1, %v75
    %v77 = vrot.slane %v57, %v76
    %v78 = vlaneseq
    %v79 = vshrl.u32 %v78, 7
    %v80 = vsub.s32 2, %v79
    %v81 = vrot.slane %v57, %v80
    %v82 = vlaneseq
    %v83 = vshrl.u32 %v82, 7
    %v84 = vsub.s32 3, %v83
    %v85 = vrot.slane %v57, %v84
    %v86 = vlaneseq
    %v87 = vshrl.u32 %v86, 7
    %v88 = vsub.s32 4, %v87
    %v89 = vrot.slane %v57, %v88
    %v90 = vlaneseq
    %v91 = vshrl.u32 %v90, 7
    %v92 = vsub.s32 5, %v91
    %v93 = vrot.slane %v57, %v92
    %v94 = vlaneseq
    %v95 = vshrl.u32 %v94, 7
    %v96 = vsub.s32 6, %v95
    %v97 = vrot.slane %v57, %v96
    %v98 = vlaneseq
    %v99 = vshrl.u32 %v98, 7
    %v100 = vsub.s32 7, %v99
    %v101 = vrot.slane %v57, %v100
    %v102 = vlaneseq
    %v103 = vshrl.u32 %v102, 7
    %v104 = vsub.s32 0, %v103
    %v105 = vrot.slane %v61, %v104
    %v106 = vlaneseq
    %v107 = vshrl.u32 %v106, 7
    %v108 = vsub.s32 1, %v107
    %v109 = vrot.slane %v61, %v108
    %v110 = vlaneseq
    %v111 = vshrl.u32 %v110, 7
    %v112 = vsub.s32 2, %v111
    %v113 = vrot.slane %v61, %v112
    %v114 = vlaneseq
    %v115 = vshrl.u32 %v114, 7
    %v116 = vsub.s32 3, %v115
    %v117 = vrot.slane %v61, %v116
    %v118 = vlaneseq
    %v119 = vshrl.u32 %v118, 7
    %v120 = vsub.s32 4, %v119
    %v121 = vrot.slane %v61, %v120
    %v122 = vlaneseq
    %v123 = vshrl.u32 %v122, 7
    %v124 = vsub.s32 5, %v123
    %v125 = vrot.slane %v61, %v124
    %v126 = vlaneseq
    %v127 = vshrl.u32 %v126, 7
    %v128 = vsub.s32 6, %v127
    %v129 = vrot.slane %v61, %v128
    %v130 = vlaneseq
    %v131 = vshrl.u32 %v130, 7
    %v132 = vsub.s32 7, %v131
    %v133 = vrot.slane %v61, %v132
    %v150 = vmul.f32 %v38, %v73
    %v151 = vmul.f32 %v39, %v77
    %v152 = vmul.f32 %v40, %v81
    %v153 = vmul.f32 %v41, %v85
    %v154 = vmul.f32 %v42, %v89
    %v155 = vmul.f32 %v43, %v93
    %v156 = vmul.f32 %v44, %v97
    %v157 = vmul.f32 %v45, %v101
    %v158 = vmul.f32 %v46, %v105
    %v159 = vmul.f32 %v47, %v109
    %v160 = vmul.f32 %v48, %v113
    %v161 = vmul.f32 %v49, %v117
    %v162 = vmul.f32 %v50, %v121
    %v163 = vmul.f32 %v51, %v125
    %v164 = vmul.f32 %v52, %v129
    %v165 = vmul.f32 %v53, %v133
    %v166 = vadd.f32 %v150, %v151
    %v167 = vadd.f32 %v166, %v152
    %v168 = vadd.f32 %v167, %v153
    %v169 = vadd.f32 %v168, %v154
    %v170 = vadd.f32 %v169, %v155
    %v171 = vadd.f32 %v170, %v156
    %v172 = vadd.f32 %v171, %v157
    %v173 = vadd.f32 %v172, %v158
    %v174 = vadd.f32 %v173, %v159
    %v175 = vadd.f32 %v174, %v160
    %v176 = vadd.f32 %v175, %v161
    %v177 = vadd.f32 %v176, %v162
    %v178 = vadd.f32 %v177, %v163
    %v179 = vadd.f32 %v178, %v164
    %v180 = vadd.f32 %v179, %v165
    %181 = vadd.xlane.f32.xlu0 %v180
    %v182 = vpop.xlane.xlu0 %181
    %v183 = vadd.f32 %v182, %v62
    %185 = vrot.lane.b32.xlu0 %v183, 1
    %v186 = vpop.permute.xlu0 %185
    %v188 = vmul.f32 %v62, %v186
    %v189 = vxor.u32 %v188, 2147483648
    %v190 = vmul.f32 %v189, 1.442695
    %v191 = vpow.pop %v190
    %v192 = vadd.f32 %v191, 1.0
    %v193 = vrcp.pop %v192
    %v194 = vmul.f32 1.0, %v193
    %196 = vset.pattern.permute.xlu0 1
    %197 = vperm.xlu0 %196, %v194
    %v198 = vpop.permute.xlu0 %197
    %v199 = vrot.slane %v198, 2
    %v201 = vmul.f32 %v63, %v199
    %v202 = vmul.f32 %v64, %v199
    %vm205 = vcmask 1041408
    %v206 = vrot.slane %v201, 6
    %v207 = vrot.slane %v202, 6
    %v208 = vsel %vm205, %v206, %v207
    %vm210 = vcmask 64512
    %v211 = vsel %vm210, %v208, 0.0
    %v212 = vrot.slane %v211, 4
    %v213 = vadd.f32 %v211, %v212
    %v214 = vrot.slane %v213, 2
    %v215 = vadd.f32 %v213, %v214
    %v216 = vrot.slane %v215, 1
    %v217 = vadd.f32 %v215, %v216
    %v218 = vadd.f32 %v66, %v217
    %v219 = vmul.f32 %v65, %v199
    %v221 = vrot.slane %v219, 6
    %v222 = vsel %vm205, %v207, %v221
    %v224 = vsel %vm210, %v222, 0.0
    %v225 = vrot.slane %v224, 4
    %v226 = vadd.f32 %v224, %v225
    %v227 = vrot.slane %v226, 2
    %v228 = vadd.f32 %v226, %v227
    %v229 = vrot.slane %v228, 1
    %v230 = vadd.f32 %v228, %v229
    %v231 = vadd.f32 %v66, %v230
    %v233 = vrot.slane %v231, 1
    %v235 = vmul.f32 %v218, %v233
    %v236 = vmul.f32 %v66, %v199
    %v238 = vrot.slane %v236, 6
    %v239 = vsel %vm205, %v221, %v238
    %v241 = vsel %vm210, %v239, 0.0
    %v242 = vrot.slane %v241, 4
    %v243 = vadd.f32 %v241, %v242
    %v244 = vrot.slane %v243, 2
    %v245 = vadd.f32 %v243, %v244
    %v246 = vrot.slane %v245, 1
    %v247 = vadd.f32 %v245, %v246
    %v248 = vadd.f32 %v67, %v247
    %v250 = vrot.slane %v248, 2
    %v252 = vmul.f32 %v235, %v250
    %v253 = vlaneseq
    %v254 = vand.u32 %v253, 127
    %vm255 = vcmask 63494
    %v256 = vsel %vm255, %v252, -inf
    %257 = vmax.xlane.f32.xlu0 %v256
    %v258 = vpop.xlane.xlu0 %257
    %v259 = vrot.slane %v258, 4
    %v260 = vmax.f32 %v258, %v259
    %v261 = vrot.slane %v260, 2
    %v262 = vmax.f32 %v260, %v261
    %v263 = vrot.slane %v262, 1
    %v264 = vmax.f32 %v262, %v263
    %s265 = vtos %v264
    %v266 = vstv %s265
    %vm267 = vcmp.ge.f32.partialorder %v252, %v266
    %v268 = vsel %vm267, %v254, 8
    %v269 = vsel %vm255, %v268, 2147483647
    %v270 = vand.u32 %v269, 65535
    %v271 = vshra.s32 %v269, 16
    %v272 = vcvt.s32.f32 %v270
    %v273 = vcvt.s32.f32 %v271
    %274 = vmin.xlane.f32.xlu0 %v273
    %v275 = vpop.xlane.xlu0 %274
    %vm276 = vcmp.eq.f32.partialorder %v273, %v275
    %v277 = vsel %vm276, %v272, inf
    %278 = vmin.xlane.f32.xlu0 %v277
    %v279 = vpop.xlane.xlu0 %278
    %v280 = vcvt.f32.s32 %v279
    %v281 = vcvt.f32.s32 %v275
    %v282 = vshll.u32 %v281, 16
    %v283 = vadd.s32 %v282, %v280
    %v284 = vrot.slane %v283, 4
    %vm285 = vcmp.lt.s32.totalorder %v283, %v284
    %v286 = vsel %vm285, %v283, %v284
    %v287 = vrot.slane %v286, 2
    %vm288 = vcmp.lt.s32.totalorder %v286, %v287
    %v289 = vsel %vm288, %v286, %v287
    %v290 = vrot.slane %v289, 1
    %vm291 = vcmp.lt.s32.totalorder %v289, %v290
    %v292 = vsel %vm291, %v289, %v290
    %s293 = vtos %v292
    %v294 = vstv %s293
    %vm295 = vcmp.eq.s32.totalorder %v254, %v294
    %v296 = vsel %vm295, 1, 0
    %v297 = vcvt.s32.f32 %v296
    %v298 = vmul.f32 %v63, %v297
    %vm299 = vcmask 60418
    %v300 = vsel %vm299, %v298, 0.0
    %301 = vadd.xlane.f32.xlu0 %v300
    %v302 = vpop.xlane.xlu0 %301
    %vm303 = vcmask 1043458
    %v304 = vsel %vm303, %v302, -inf
    %v305 = vrot.slane %v304, 4
    %v306 = vmax.f32 %v304, %v305
    %v307 = vrot.slane %v306, 2
    %v308 = vmax.f32 %v306, %v307
    %v309 = vrot.slane %v308, 1
    %v310 = vmax.f32 %v308, %v309
    %v311 = vsub.f32 %v302, %v310
    %v312 = vmul.f32 %v311, 1.442695
    %v313 = vpow.pop %v312
    %v315 = vrot.slane %v313, 2
    %v317 = vsel %vm205, %v315, 0.0
    %v318 = vrot.slane %v317, 4
    %v319 = vadd.f32 %v317, %v318
    %v320 = vrot.slane %v319, 2
    %v321 = vadd.f32 %v319, %v320
    %v322 = vrot.slane %v321, 1
    %v323 = vadd.f32 %v321, %v322
    %v324 = vrcp.pop %v323
    %v325 = vmul.f32 %v313, %v324
    %v327 = vrot.slane %v63, 6
    %v329 = vmul.f32 %v325, %v327
    %v331 = vrot.slane %v329, 2
    %vm333 = vcmask 1024
    %v334 = vsel %vm333, %v331, 0.0
    %v335 = vrot.slane %v334, 4
    %v336 = vadd.f32 %v334, %v335
    %v337 = vrot.slane %v336, 2
    %v338 = vadd.f32 %v336, %v337
    %v339 = vrot.slane %v338, 1
    %v340 = vadd.f32 %v338, %v339
    %vm341 = vcmask 0
    %342 = vst.msk [vmem:[#allocation7] sm:$0x1] %vm341, %v340
    // Predicated region
    $region18: #{tpu_custom_call.1} parent=1 // pred_check
      _
    $region19: #{tpu_custom_call.1} parent=1 // pred_check_branch
      %344 = sbr.rel (0) target = $region21
    $region20: #{tpu_custom_call.1} parent=1 // pred_region
      %s346 = ssub.s32 16, 16
      %347 = vsyncadd [#allocation4], %s346
      %s349 = sshll.u32 [#allocation7], 4
      %s350 = int_to_ptr.vmem [resolvable:$true] %s349
      %352 = dma.vmem_to_hbm [thread:$0]  %s350, 16, %s2, [#allocation4]
    $region21: #{tpu_custom_call.1} parent=1 // pred_fallthru
      _
    // Predicated region
    $region22: #{tpu_custom_call.1} parent=1 // pred_check
      _
    $region23: #{tpu_custom_call.1} parent=1 // pred_check_branch
      %354 = sbr.rel (0) target = $region25
    $region24: #{tpu_custom_call.1} parent=1 // pred_region
      %355 = dma.done [#allocation4], 16
    $region25: #{tpu_custom_call.1} parent=1 // pred_fallthru
      _
    %356 = vsyncpa [#allocation3], 1
    %357 = vsyncpa [#allocation6], 1
    %358 = vsyncpa [#allocation4], 1

</llo_original>
